<compile_context>
chip_gen: v7x
topology: tpu7x:2x2x1
jax: 0.10.0
libtpu: 0.0.40
codegen_flags: <defaults>
</compile_context>

<pallas_src>
import numpy as np
import jax
import jax.numpy as jnp
from jax.experimental import pallas as pl
from jax.experimental.pallas import tpu as pltpu

POOL = 4  # F.avg_pool2d(x, 4): kernel=4, stride=4, no padding


def _tpu_generation():
    try:
        kind = jax.devices()[0].device_kind.lower()
    except Exception:
        return "unknown"
    if "v7" in kind:
        return "v7x"
    if "v6" in kind:
        return "v6e"
    if "v5" in kind:
        return "v5e"
    return "unknown"


_GEN = _tpu_generation()
# (Variant-A out_cols cutoff, target input-tile bytes, vmem_limit_bytes, want >=4 grid steps)
_GEN_PARAMS = {
    "v7x":     (128, 8 * 1024 * 1024, 48 * 1024 * 1024, True),
    "v6e":     (256, 2 * 1024 * 1024, 32 * 1024 * 1024, False),
    "v5e":     (128, 2 * 1024 * 1024, 32 * 1024 * 1024, False),
    "unknown": (128, 2 * 1024 * 1024, 32 * 1024 * 1024, False),
}


def _relu_pool_kernel(x_ref, p_ref, o_ref):
    # x_ref: (rt, cols)  p_ref: (cols, out_cols)  o_ref: (rt, out_cols)
    x = jnp.maximum(x_ref[...], jnp.zeros((), x_ref.dtype))              # ReLU (VPU)
    o_ref[...] = jnp.dot(                                                 # 4x4 avg pool (MXU)
        x, p_ref[...], preferred_element_type=jnp.float32
    ).astype(o_ref.dtype)


def _row_tile(rows, cols, itemsize, target_bytes, want_min_steps):
    """Row tile: dtype-aware sublane alignment, ~target_bytes of input per step."""
    pack = max(8, 32 // itemsize)          # 8 for f32, 16 for bf16, 32 for int8/fp8
    if rows <= pack:
        return rows
    rt = (target_bytes // (cols * itemsize)) // pack * pack
    rt = max(pack, int(rt))
    if want_min_steps and rows >= 4 * pack:
        # Guarantee >= 4 grid steps so the single "parallel" axis can shard across
        # both v7x TensorCores.
        rt = min(rt, (rows // (4 * pack)) * pack)
    return int(min(rt, rows))


def reshape1_forward(x):
    """x: (N, C, H, W) -> (N, C*(H//4)*(W//4)); matches Reshape1.forward."""
    N, C, H, W = x.shape
    Ho, Wo = H // POOL, W // POOL
    assert Ho > 0 and Wo > 0, "avg_pool2d(4) needs H, W >= 4"
    Hc = Ho * POOL

    # avg_pool of integer tensors is undefined for this kernel; promote to f32.
    if not jnp.issubdtype(x.dtype, jnp.floating):
        x = x.astype(jnp.float32)
    dtype = x.dtype
    itemsize = jnp.dtype(dtype).itemsize

    cutoff, target_bytes, vmem_limit, want_min_steps = _GEN_PARAMS[_GEN]

    if Ho * Wo <= cutoff:
        # Variant A: rows index (n, c); one (H*W, Ho*Wo) matmul folds both pooling axes
        # and emits the fully flattened (ho, wo) output on the lanes.  The floor-crop is
        # folded into P: columns with h//4 >= Ho or w//4 >= Wo simply match no output.
        rows, cols, out_cols = N * C, H * W, Ho * Wo
        x2 = x.reshape(rows, cols)
        col = np.arange(cols)
        h, w = col // W, col % W
        ocol = np.arange(out_cols)
        ho, wo = ocol // Wo, ocol % Wo
        mask = ((h[:, None] // POOL) == ho[None, :]) & \
               ((w[:, None] // POOL) == wo[None, :])
    else:
        # Variant B (large spatial): rows index (n, c, ho); a small (4*W, Wo) matmul
        # reduces each 4x4 window.  The W-remainder is folded into P; the H-remainder
        # still needs a crop (rare path).
        if H != Hc:
            x = x[:, :, :Hc, :]
        rows, cols, out_cols = N * C * Ho, POOL * W, Wo
        x2 = x.reshape(rows, cols)
        w = np.arange(cols) % W
        ocol = np.arange(out_cols)
        mask = (w[:, None] // POOL) == ocol[None, :]

    # Baked compile-time constant pooling matrix (1/16 is exact in bf16/f16/f32).
    pool_np = (mask.astype(np.float32) / float(POOL * POOL)).astype(dtype)
    pool_mat = jnp.asarray(pool_np)

    rt = _row_tile(rows, cols, itemsize, target_bytes, want_min_steps)
    grid = (pl.cdiv(rows, rt),)

    def _run(single_buffer_p):
        p_kwargs = {"pipeline_mode": pl.Buffered(1)} if single_buffer_p else {}
        return pl.pallas_call(
            _relu_pool_kernel,
            out_shape=jax.ShapeDtypeStruct((rows, out_cols), dtype),
            grid_spec=pltpu.PrefetchScalarGridSpec(
                num_scalar_prefetch=0,
                grid=grid,
                in_specs=[
                    pl.BlockSpec((rt, cols), lambda i: (i, 0)),
                    # Constant block index -> P stays resident in VMEM; single-buffered.
                    pl.BlockSpec((cols, out_cols), lambda i: (0, 0), **p_kwargs),
                ],
                out_specs=pl.BlockSpec((rt, out_cols), lambda i: (i, 0)),
            ),
            compiler_params=pltpu.CompilerParams(
                dimension_semantics=("parallel",),
                vmem_limit_bytes=vmem_limit,
            ),
        )(x2, pool_mat)

    try:
        out2 = _run(True)
    except Exception:
        # Fallback if this runtime rejects pipeline_mode=pl.Buffered(1).
        out2 = _run(False)

    # torch .view(N, -1) flattens (C, Ho, Wo) in C-order; both row layouts above already
    # produce exactly that order, so this reshape is free metadata.
    return out2.reshape(N, C * Ho * Wo)


def reshape1_reference(x):
    """Pure-JAX reference mirroring the PyTorch forward."""
    r = jnp.maximum(x, 0)
    N, C, H, W = r.shape
    Ho, Wo = H // POOL, W // POOL
    r = r[:, :, :Ho * POOL, :Wo * POOL]
    r = r.reshape(N, C, Ho, POOL, Wo, POOL).mean(axis=(3, 5))
    return r.reshape(N, -1)


if __name__ == "__main__":
    key = jax.random.PRNGKey(0)
    x = jax.random.normal(key, (2, 4, 16, 16), dtype=jnp.float32)

    out = reshape1_forward(x)
    out = jax.block_until_ready(out)

    ref = reshape1_reference(x)
    assert out.shape == (2, 4 * 4 * 4), out.shape
    assert jnp.allclose(out, ref, atol=1e-4, rtol=1e-4), "mismatch vs reference"

    print("KERNEL_OK")
</pallas_src>

<mosaic_0001>
module attributes {stable_mosaic.version = 11 : i64} {
  func.func @_relu_pool_kernel(%arg0: i32, %arg1: memref<8x256xf32, #tpu.memory_space<vmem>>, %arg2: memref<256x16xf32, #tpu.memory_space<vmem>>, %arg3: memref<8x16xf32, #tpu.memory_space<vmem>>) attributes {dimension_semantics = [#tpu.dimension_semantics<parallel>], iteration_bounds = array<i64: 1>, scalar_prefetch = 0 : i64, scratch_operands = 0 : i64, tpu.core_type = #tpu.core_type<tc>, window_params = [{transform_indices = @transform_0, window_bounds = array<i64: 8, 256>}, {pipeline_mode = #tpu.pipeline_mode<synchronous>, transform_indices = @transform_1, window_bounds = array<i64: 256, 16>}, {transform_indices = @transform_2, window_bounds = array<i64: 8, 16>}]} {
    %c0 = arith.constant 0 : index
    %c0_0 = arith.constant 0 : index
    %0 = vector.load %arg1[%c0, %c0_0] : memref<8x256xf32, #tpu.memory_space<vmem>>, vector<8x256xf32>
    %cst = arith.constant 0.000000e+00 : f32
    %1 = vector.broadcast %cst : f32 to vector<8x256xf32>
    %2 = arith.maximumf %0, %1 : vector<8x256xf32>
    %c0_1 = arith.constant 0 : index
    %c0_2 = arith.constant 0 : index
    %3 = vector.load %arg2[%c0_1, %c0_2] : memref<256x16xf32, #tpu.memory_space<vmem>>, vector<256x16xf32>
    %cst_3 = arith.constant dense<0.000000e+00> : vector<8x16xf32>
    %4 = tpu.matmul %2, %3, %cst_3 {dimension_numbers = #tpu.dot_dimension_numbers<[1], [0], [0], [1], [0, 0, 1, 1], [], []>} : vector<8x256xf32>, vector<256x16xf32>, vector<8x16xf32> -> vector<8x16xf32>
    %c0_4 = arith.constant 0 : index
    %c0_5 = arith.constant 0 : index
    %5 = vector.load %arg3[%c0_4, %c0_5] : memref<8x16xf32, #tpu.memory_space<vmem>>, vector<8x16xf32>
    tpu.vector_store %arg3[%c0_4, %c0_5], %4 {strides = array<i32>} : memref<8x16xf32, #tpu.memory_space<vmem>>, vector<8x16xf32>,
    return
  }
  func.func @transform_0(%arg0: i32) -> (i32, i32) {
    %c0_i32 = arith.constant 0 : i32
    %c0_i32_0 = arith.constant 0 : i32
    return %arg0, %c0_i32 : i32, i32
  }
  func.func @transform_1(%arg0: i32) -> (i32, i32) {
    %c0_i32 = arith.constant 0 : i32
    %c0_i32_0 = arith.constant 0 : i32
    %c0_i32_1 = arith.constant 0 : i32
    return %c0_i32, %c0_i32_0 : i32, i32
  }
  func.func @transform_2(%arg0: i32) -> (i32, i32) {
    %c0_i32 = arith.constant 0 : i32
    %c0_i32_0 = arith.constant 0 : i32
    return %arg0, %c0_i32 : i32, i32
  }
}

module attributes {stable_mosaic.version = 11 : i64} {
  func.func @_relu_pool_kernel(%arg0: i32, %arg1: memref<8x256xf32, #tpu.memory_space<vmem>>, %arg2: memref<256x16xf32, #tpu.memory_space<vmem>>, %arg3: memref<8x16xf32, #tpu.memory_space<vmem>>) attributes {dimension_semantics = [#tpu.dimension_semantics<parallel>], iteration_bounds = array<i64: 1>, scalar_prefetch = 0 : i64, scratch_operands = 0 : i64, tpu.core_type = #tpu.core_type<tc>, window_params = [{transform_indices = @transform_0, window_bounds = array<i64: 8, 256>}, {pipeline_mode = #tpu.pipeline_mode<synchronous>, transform_indices = @transform_1, window_bounds = array<i64: 256, 16>}, {transform_indices = @transform_2, window_bounds = array<i64: 8, 16>}]} {
    %c0 = arith.constant 0 : index
    %c0_0 = arith.constant 0 : index
    %0 = vector.load %arg1[%c0, %c0_0] : memref<8x256xf32, #tpu.memory_space<vmem>>, vector<8x256xf32>
    %cst = arith.constant 0.000000e+00 : f32
    %1 = vector.broadcast %cst : f32 to vector<8x256xf32>
    %2 = arith.maximumf %0, %1 : vector<8x256xf32>
    %c0_1 = arith.constant 0 : index
    %c0_2 = arith.constant 0 : index
    %3 = vector.load %arg2[%c0_1, %c0_2] : memref<256x16xf32, #tpu.memory_space<vmem>>, vector<256x16xf32>
    %cst_3 = arith.constant dense<0.000000e+00> : vector<8x16xf32>
    %4 = tpu.matmul %2, %3, %cst_3 {dimension_numbers = #tpu.dot_dimension_numbers<[1], [0], [0], [1], [0, 0, 1, 1], [], []>} : vector<8x256xf32>, vector<256x16xf32>, vector<8x16xf32> -> vector<8x16xf32>
    %c0_4 = arith.constant 0 : index
    %c0_5 = arith.constant 0 : index
    %5 = vector.load %arg3[%c0_4, %c0_5] : memref<8x16xf32, #tpu.memory_space<vmem>>, vector<8x16xf32>
    tpu.vector_store %arg3[%c0_4, %c0_5], %4 {strides = array<i32>} : memref<8x16xf32, #tpu.memory_space<vmem>>, vector<8x16xf32>,
    return
  }
  func.func @transform_0(%arg0: i32) -> (i32, i32) {
    %c0_i32 = arith.constant 0 : i32
    %c0_i32_0 = arith.constant 0 : i32
    return %arg0, %c0_i32 : i32, i32
  }
  func.func @transform_1(%arg0: i32) -> (i32, i32) {
    %c0_i32 = arith.constant 0 : i32
    %c0_i32_0 = arith.constant 0 : i32
    %c0_i32_1 = arith.constant 0 : i32
    return %c0_i32, %c0_i32_0 : i32, i32
  }
  func.func @transform_2(%arg0: i32) -> (i32, i32) {
    %c0_i32 = arith.constant 0 : i32
    %c0_i32_0 = arith.constant 0 : i32
    return %arg0, %c0_i32 : i32, i32
  }
}

</mosaic_0001>

<llo_original>
// kernel: tpu_custom_call.1
$region0: #{tpu_custom_call.1}
  #allocation0 [shape = 'u32[]', space=smem, size = 0x4, offset = 0x4, fixed_abs, tag = 'smem constant byte address 0x4 - core index']
  #allocation1 [shape = 'u32[144,128]{1,0:T(1,128)}', space=vmem, size = 0x12000, scoped, tag = 'internal scratch']
  %s0 = inlined_call_operand.vmem [shape: f32[8,256], index: 0, kind: input, shape index: {}]
  %s1 = inlined_call_operand.vmem [shape: f32[256,16], index: 1, kind: input, shape index: {}]
  %s2 = inlined_call_operand.hbm [shape: f32[8,16], index: 2, kind: output, shape index: {}]
  %s3 = sld [smem:[#allocation0]]
  $region18: #{tpu_custom_call.1} parent=0
    _
  %s5 = ssub.s32 1, %s3
  %s6 = scalar_select 0, %s5, %s3
  $region1: #{tpu_custom_call.1} parent=0
    #allocation2 [shape = 'u8[4096]{0}', space=vmem, size = 0x1000, scoped, tag = 'output window, operand 0, single buffered']
    #allocation3 [shape = 's32[1]{0}', space=sflag, size = 0x4, scoped, tag = 'scoped memory for tpu_custom_call.1']
    %7 = vsyncpa [#allocation3], 0
    // Predicated region
    $region2: #{tpu_custom_call.1} parent=1 // pred_check
      _
    $region3: #{tpu_custom_call.1} parent=1 // pred_check_branch
      %9 = sbr.rel (0) target = $region5
    $region4: #{tpu_custom_call.1} parent=1 // pred_region
      _
    $region5: #{tpu_custom_call.1} parent=1 // pred_fallthru
      _
    // Predicated region
    $region6: #{tpu_custom_call.1} parent=1 // pred_check
      _
    $region7: #{tpu_custom_call.1} parent=1 // pred_check_branch
      %11 = sbr.rel (0) target = $region9
    $region8: #{tpu_custom_call.1} parent=1 // pred_region
      _
    $region9: #{tpu_custom_call.1} parent=1 // pred_fallthru
      _
    %v12 = vld [vmem:[%s0] sm:$0xff]
    %v13 = vld [vmem:[%s0 + $0x8] sm:$0xff]
    %v14 = vmax.f32 %v12, 0.0
    %v15 = vmax.f32 %v13, 0.0
    %v16 = vld [vmem:[%s1] sm:$0xff]
    %v17 = vld [vmem:[%s1 + $0x8] sm:$0xff]
    %v18 = vld [vmem:[%s1 + $0x10] sm:$0xff]
    %v19 = vld [vmem:[%s1 + $0x18] sm:$0xff]
    %v20 = vld [vmem:[%s1 + $0x20] sm:$0xff]
    %v21 = vld [vmem:[%s1 + $0x28] sm:$0xff]
    %v22 = vld [vmem:[%s1 + $0x30] sm:$0xff]
    %v23 = vld [vmem:[%s1 + $0x38] sm:$0xff]
    %v24 = vld [vmem:[%s1 + $0x40] sm:$0xff]
    %v25 = vld [vmem:[%s1 + $0x48] sm:$0xff]
    %v26 = vld [vmem:[%s1 + $0x50] sm:$0xff]
    %v27 = vld [vmem:[%s1 + $0x58] sm:$0xff]
    %v28 = vld [vmem:[%s1 + $0x60] sm:$0xff]
    %v29 = vld [vmem:[%s1 + $0x68] sm:$0xff]
    %v30 = vld [vmem:[%s1 + $0x70] sm:$0xff]
    %v31 = vld [vmem:[%s1 + $0x78] sm:$0xff]
    %v32 = vld [vmem:[%s1 + $0x80] sm:$0xff]
    %v33 = vld [vmem:[%s1 + $0x88] sm:$0xff]
    %v34 = vld [vmem:[%s1 + $0x90] sm:$0xff]
    %v35 = vld [vmem:[%s1 + $0x98] sm:$0xff]
    %v36 = vld [vmem:[%s1 + $0xa0] sm:$0xff]
    %v37 = vld [vmem:[%s1 + $0xa8] sm:$0xff]
    %v38 = vld [vmem:[%s1 + $0xb0] sm:$0xff]
    %v39 = vld [vmem:[%s1 + $0xb8] sm:$0xff]
    %v40 = vld [vmem:[%s1 + $0xc0] sm:$0xff]
    %v41 = vld [vmem:[%s1 + $0xc8] sm:$0xff]
    %v42 = vld [vmem:[%s1 + $0xd0] sm:$0xff]
    %v43 = vld [vmem:[%s1 + $0xd8] sm:$0xff]
    %v44 = vld [vmem:[%s1 + $0xe0] sm:$0xff]
    %v45 = vld [vmem:[%s1 + $0xe8] sm:$0xff]
    %v46 = vld [vmem:[%s1 + $0xf0] sm:$0xff]
    %v47 = vld [vmem:[%s1 + $0xf8] sm:$0xff]
    %48 = vmatprep.subr.mxu0 0.0
    %49 = vmatpush1.msra.mxu0 %v16
    %50 = vmatprep.subr.mxu0 0.0
    %51 = vmatpush1.msra.mxu0 %v17
    %52 = vmatprep.subr.mxu0 0.0
    %53 = vmatpush1.msra.mxu0 %v18
    %54 = vmatprep.subr.mxu0 0.0
    %55 = vmatpush1.msra.mxu0 %v19
    %56 = vmatprep.subr.mxu0 0.0
    %57 = vmatpush1.msra.mxu0 %v20
    %58 = vmatprep.subr.mxu0 0.0
    %59 = vmatpush1.msra.mxu0 %v21
    %60 = vmatprep.subr.mxu0 0.0
    %61 = vmatpush1.msra.mxu0 %v22
    %62 = vmatprep.subr.mxu0 0.0
    %63 = vmatpush1.msra.mxu0 %v23
    %64 = vmatprep.subr.mxu0 0.0
    %65 = vmatpush1.msra.mxu0 %v24
    %66 = vmatprep.subr.mxu0 0.0
    %67 = vmatpush1.msra.mxu0 %v25
    %68 = vmatprep.subr.mxu0 0.0
    %69 = vmatpush1.msra.mxu0 %v26
    %70 = vmatprep.subr.mxu0 0.0
    %71 = vmatpush1.msra.mxu0 %v27
    %72 = vmatprep.subr.mxu0 0.0
    %73 = vmatpush1.msra.mxu0 %v28
    %74 = vmatprep.subr.mxu0 0.0
    %75 = vmatpush1.msra.mxu0 %v29
    %76 = vmatprep.subr.mxu0 0.0
    %77 = vmatpush1.msra.mxu0 %v30
    %78 = vmatprep.subr.mxu0 0.0
    %79 = vmatpush1.msra.mxu0 %v31
    %80 = vmatprep.subr.mxu0 0.0
    %81 = vmatpush1.msra.mxu0 %v32
    %82 = vmatprep.subr.mxu0 0.0
    %83 = vmatpush1.msra.mxu0 %v33
    %84 = vmatprep.subr.mxu0 0.0
    %85 = vmatpush1.msra.mxu0 %v34
    %86 = vmatprep.subr.mxu0 0.0
    %87 = vmatpush1.msra.mxu0 %v35
    %88 = vmatprep.subr.mxu0 0.0
    %89 = vmatpush1.msra.mxu0 %v36
    %90 = vmatprep.subr.mxu0 0.0
    %91 = vmatpush1.msra.mxu0 %v37
    %92 = vmatprep.subr.mxu0 0.0
    %93 = vmatpush1.msra.mxu0 %v38
    %94 = vmatprep.subr.mxu0 0.0
    %95 = vmatpush1.msra.mxu0 %v39
    %96 = vmatprep.subr.mxu0 0.0
    %97 = vmatpush1.msra.mxu0 %v40
    %98 = vmatprep.subr.mxu0 0.0
    %99 = vmatpush1.msra.mxu0 %v41
    %100 = vmatprep.subr.mxu0 0.0
    %101 = vmatpush1.msra.mxu0 %v42
    %102 = vmatprep.subr.mxu0 0.0
    %103 = vmatpush1.msra.mxu0 %v43
    %104 = vmatprep.subr.mxu0 0.0
    %105 = vmatpush1.msra.mxu0 %v44
    %106 = vmatprep.subr.mxu0 0.0
    %107 = vmatpush1.msra.mxu0 %v45
    %108 = vmatprep.subr.mxu0 0.0
    %109 = vmatpush1.msra.mxu0 %v46
    %110 = vmatprep.subr.mxu0 0.0
    %111 = vmatpush1.msra.mxu0 %v47
    %112 = vmatprep.mubr.f32.mxu0 %v15
    %113 = vmatmul.mubr.f32.gmra.mrb[0].mxu0 %v14
    %v114 = vpop.f32.mrb[0].mxu0
    %v115 = vadd.f32 0.0, %v114
    %v116 = vpop.f32.mrb[0].mxu0
    %117 = vdwg.mxu0
    %vm118 = vcmask 130048
    %119 = vst.msk [vmem:[#allocation2] sm:$0xff] %vm118, %v115
    // Predicated region
    $region10: #{tpu_custom_call.1} parent=1 // pred_check
      _
    $region11: #{tpu_custom_call.1} parent=1 // pred_check_branch
      %121 = sbr.rel (0) target = $region13
    $region12: #{tpu_custom_call.1} parent=1 // pred_region
      %s123 = ssub.s32 128, 128
      %124 = vsyncadd [#allocation3], %s123
      %s126 = sshll.u32 [#allocation2], 4
      %s127 = int_to_ptr.vmem [resolvable:$true] %s126
      %129 = dma.vmem_to_hbm [thread:$0]  %s127, 128, %s2, [#allocation3]
    $region13: #{tpu_custom_call.1} parent=1 // pred_fallthru
      _
    // Predicated region
    $region14: #{tpu_custom_call.1} parent=1 // pred_check
      _
    $region15: #{tpu_custom_call.1} parent=1 // pred_check_branch
      %131 = sbr.rel (0) target = $region17
    $region16: #{tpu_custom_call.1} parent=1 // pred_region
      %132 = dma.done [#allocation3], 128
    $region17: #{tpu_custom_call.1} parent=1 // pred_fallthru
      _
    %133 = vsyncpa [#allocation3], 1

// kernel: tpu_custom_call.1
$region0: #{tpu_custom_call.1}
  #allocation0 [shape = 'u32[]', space=smem, size = 0x4, offset = 0x4, fixed_abs, tag = 'smem constant byte address 0x4 - core index']
  #allocation1 [shape = 'u32[144,128]{1,0:T(1,128)}', space=vmem, size = 0x12000, scoped, tag = 'internal scratch']
  %s0 = inlined_call_operand.vmem [shape: f32[8,256], index: 0, kind: input, shape index: {}]
  %s1 = inlined_call_operand.vmem [shape: f32[256,16], index: 1, kind: input, shape index: {}]
  %s2 = inlined_call_operand.hbm [shape: f32[8,16], index: 2, kind: output, shape index: {}]
  %s3 = sld [smem:[#allocation0]]
  $region18: #{tpu_custom_call.1} parent=0
    _
  %s5 = ssub.s32 1, %s3
  %s6 = scalar_select 0, %s5, %s3
  $region1: #{tpu_custom_call.1} parent=0
    #allocation2 [shape = 'u8[4096]{0}', space=vmem, size = 0x1000, scoped, tag = 'output window, operand 0, single buffered']
    #allocation3 [shape = 's32[1]{0}', space=sflag, size = 0x4, scoped, tag = 'scoped memory for tpu_custom_call.1']
    %7 = vsyncpa [#allocation3], 0
    // Predicated region
    $region2: #{tpu_custom_call.1} parent=1 // pred_check
      _
    $region3: #{tpu_custom_call.1} parent=1 // pred_check_branch
      %9 = sbr.rel (0) target = $region5
    $region4: #{tpu_custom_call.1} parent=1 // pred_region
      _
    $region5: #{tpu_custom_call.1} parent=1 // pred_fallthru
      _
    // Predicated region
    $region6: #{tpu_custom_call.1} parent=1 // pred_check
      _
    $region7: #{tpu_custom_call.1} parent=1 // pred_check_branch
      %11 = sbr.rel (0) target = $region9
    $region8: #{tpu_custom_call.1} parent=1 // pred_region
      _
    $region9: #{tpu_custom_call.1} parent=1 // pred_fallthru
      _
    %v12 = vld [vmem:[%s0] sm:$0xff]
    %v13 = vld [vmem:[%s0 + $0x8] sm:$0xff]
    %v14 = vmax.f32 %v12, 0.0
    %v15 = vmax.f32 %v13, 0.0
    %v16 = vld [vmem:[%s1] sm:$0xff]
    %v17 = vld [vmem:[%s1 + $0x8] sm:$0xff]
    %v18 = vld [vmem:[%s1 + $0x10] sm:$0xff]
    %v19 = vld [vmem:[%s1 + $0x18] sm:$0xff]
    %v20 = vld [vmem:[%s1 + $0x20] sm:$0xff]
    %v21 = vld [vmem:[%s1 + $0x28] sm:$0xff]
    %v22 = vld [vmem:[%s1 + $0x30] sm:$0xff]
    %v23 = vld [vmem:[%s1 + $0x38] sm:$0xff]
    %v24 = vld [vmem:[%s1 + $0x40] sm:$0xff]
    %v25 = vld [vmem:[%s1 + $0x48] sm:$0xff]
    %v26 = vld [vmem:[%s1 + $0x50] sm:$0xff]
    %v27 = vld [vmem:[%s1 + $0x58] sm:$0xff]
    %v28 = vld [vmem:[%s1 + $0x60] sm:$0xff]
    %v29 = vld [vmem:[%s1 + $0x68] sm:$0xff]
    %v30 = vld [vmem:[%s1 + $0x70] sm:$0xff]
    %v31 = vld [vmem:[%s1 + $0x78] sm:$0xff]
    %v32 = vld [vmem:[%s1 + $0x80] sm:$0xff]
    %v33 = vld [vmem:[%s1 + $0x88] sm:$0xff]
    %v34 = vld [vmem:[%s1 + $0x90] sm:$0xff]
    %v35 = vld [vmem:[%s1 + $0x98] sm:$0xff]
    %v36 = vld [vmem:[%s1 + $0xa0] sm:$0xff]
    %v37 = vld [vmem:[%s1 + $0xa8] sm:$0xff]
    %v38 = vld [vmem:[%s1 + $0xb0] sm:$0xff]
    %v39 = vld [vmem:[%s1 + $0xb8] sm:$0xff]
    %v40 = vld [vmem:[%s1 + $0xc0] sm:$0xff]
    %v41 = vld [vmem:[%s1 + $0xc8] sm:$0xff]
    %v42 = vld [vmem:[%s1 + $0xd0] sm:$0xff]
    %v43 = vld [vmem:[%s1 + $0xd8] sm:$0xff]
    %v44 = vld [vmem:[%s1 + $0xe0] sm:$0xff]
    %v45 = vld [vmem:[%s1 + $0xe8] sm:$0xff]
    %v46 = vld [vmem:[%s1 + $0xf0] sm:$0xff]
    %v47 = vld [vmem:[%s1 + $0xf8] sm:$0xff]
    %48 = vmatprep.subr.mxu0 0.0
    %49 = vmatpush1.msra.mxu0 %v16
    %50 = vmatprep.subr.mxu0 0.0
    %51 = vmatpush1.msra.mxu0 %v17
    %52 = vmatprep.subr.mxu0 0.0
    %53 = vmatpush1.msra.mxu0 %v18
    %54 = vmatprep.subr.mxu0 0.0
    %55 = vmatpush1.msra.mxu0 %v19
    %56 = vmatprep.subr.mxu0 0.0
    %57 = vmatpush1.msra.mxu0 %v20
    %58 = vmatprep.subr.mxu0 0.0
    %59 = vmatpush1.msra.mxu0 %v21
    %60 = vmatprep.subr.mxu0 0.0
    %61 = vmatpush1.msra.mxu0 %v22
    %62 = vmatprep.subr.mxu0 0.0
    %63 = vmatpush1.msra.mxu0 %v23
    %64 = vmatprep.subr.mxu0 0.0
    %65 = vmatpush1.msra.mxu0 %v24
    %66 = vmatprep.subr.mxu0 0.0
    %67 = vmatpush1.msra.mxu0 %v25
    %68 = vmatprep.subr.mxu0 0.0
    %69 = vmatpush1.msra.mxu0 %v26
    %70 = vmatprep.subr.mxu0 0.0
    %71 = vmatpush1.msra.mxu0 %v27
    %72 = vmatprep.subr.mxu0 0.0
    %73 = vmatpush1.msra.mxu0 %v28
    %74 = vmatprep.subr.mxu0 0.0
    %75 = vmatpush1.msra.mxu0 %v29
    %76 = vmatprep.subr.mxu0 0.0
    %77 = vmatpush1.msra.mxu0 %v30
    %78 = vmatprep.subr.mxu0 0.0
    %79 = vmatpush1.msra.mxu0 %v31
    %80 = vmatprep.subr.mxu0 0.0
    %81 = vmatpush1.msra.mxu0 %v32
    %82 = vmatprep.subr.mxu0 0.0
    %83 = vmatpush1.msra.mxu0 %v33
    %84 = vmatprep.subr.mxu0 0.0
    %85 = vmatpush1.msra.mxu0 %v34
    %86 = vmatprep.subr.mxu0 0.0
    %87 = vmatpush1.msra.mxu0 %v35
    %88 = vmatprep.subr.mxu0 0.0
    %89 = vmatpush1.msra.mxu0 %v36
    %90 = vmatprep.subr.mxu0 0.0
    %91 = vmatpush1.msra.mxu0 %v37
    %92 = vmatprep.subr.mxu0 0.0
    %93 = vmatpush1.msra.mxu0 %v38
    %94 = vmatprep.subr.mxu0 0.0
    %95 = vmatpush1.msra.mxu0 %v39
    %96 = vmatprep.subr.mxu0 0.0
    %97 = vmatpush1.msra.mxu0 %v40
    %98 = vmatprep.subr.mxu0 0.0
    %99 = vmatpush1.msra.mxu0 %v41
    %100 = vmatprep.subr.mxu0 0.0
    %101 = vmatpush1.msra.mxu0 %v42
    %102 = vmatprep.subr.mxu0 0.0
    %103 = vmatpush1.msra.mxu0 %v43
    %104 = vmatprep.subr.mxu0 0.0
    %105 = vmatpush1.msra.mxu0 %v44
    %106 = vmatprep.subr.mxu0 0.0
    %107 = vmatpush1.msra.mxu0 %v45
    %108 = vmatprep.subr.mxu0 0.0
    %109 = vmatpush1.msra.mxu0 %v46
    %110 = vmatprep.subr.mxu0 0.0
    %111 = vmatpush1.msra.mxu0 %v47
    %112 = vmatprep.mubr.f32.mxu0 %v15
    %113 = vmatmul.mubr.f32.gmra.mrb[0].mxu0 %v14
    %v114 = vpop.f32.mrb[0].mxu0
    %v115 = vadd.f32 0.0, %v114
    %v116 = vpop.f32.mrb[0].mxu0
    %117 = vdwg.mxu0
    %vm118 = vcmask 130048
    %119 = vst.msk [vmem:[#allocation2] sm:$0xff] %vm118, %v115
    // Predicated region
    $region10: #{tpu_custom_call.1} parent=1 // pred_check
      _
    $region11: #{tpu_custom_call.1} parent=1 // pred_check_branch
      %121 = sbr.rel (0) target = $region13
    $region12: #{tpu_custom_call.1} parent=1 // pred_region
      %s123 = ssub.s32 128, 128
      %124 = vsyncadd [#allocation3], %s123
      %s126 = sshll.u32 [#allocation2], 4
      %s127 = int_to_ptr.vmem [resolvable:$true] %s126
      %129 = dma.vmem_to_hbm [thread:$0]  %s127, 128, %s2, [#allocation3]
    $region13: #{tpu_custom_call.1} parent=1 // pred_fallthru
      _
    // Predicated region
    $region14: #{tpu_custom_call.1} parent=1 // pred_check
      _
    $region15: #{tpu_custom_call.1} parent=1 // pred_check_branch
      %131 = sbr.rel (0) target = $region17
    $region16: #{tpu_custom_call.1} parent=1 // pred_region
      %132 = dma.done [#allocation3], 128
    $region17: #{tpu_custom_call.1} parent=1 // pred_fallthru
      _
    %133 = vsyncpa [#allocation3], 1

</llo_original>
